<compile_context>
chip_gen: v7x
topology: tpu7x:2x2x1
jax: 0.10.0
libtpu: 0.0.40
codegen_flags: <defaults>
</compile_context>

<pallas_src>
import jax
import jax.numpy as jnp
from jax.experimental import pallas as pl
from jax.experimental.pallas import tpu as pltpu

LANE = 128        # lane width (last dim)
B_QUANT = 16      # batch-tile quantum: bf16 sublane packing on the matmul LHS


def _round_up(n, m):
    return ((n + m - 1) // m) * m


def _vmem_capacity_bytes():
    """Physical VMEM per core, with a conservative fallback (v7x has 64 MiB)."""
    try:
        info = pltpu.get_tpu_info()
        for attr in ("vmem_capacity_bytes", "vmem_size_bytes", "vmem_bytes"):
            v = getattr(info, attr, None)
            if v:
                return int(v)
    except Exception:
        pass
    return 64 << 20


def _make_kernel(n_bottlenecks: int, out_valid: int):
    """Fused MLP-with-skip kernel for a static block count.

    log_softmax is computed only over the first `out_valid` (real) output lanes; the
    zero-padded lanes are masked out of the max/sum and sliced off in the wrapper.
    """

    def kernel(*refs):
        # refs: [x, w_in, b_in, (wA, bA, wB, bB) * n_bottlenecks, w_out, b_out, o_ref]
        x_ref = refs[0]
        o_ref = refs[-1]
        params = refs[1:-1]

        idx = 0
        # Input projection: x arrives as bf16, weights bf16, f32 accumulation on the MXU.
        w, b = params[idx], params[idx + 1]
        idx += 2
        x = jnp.dot(x_ref[...], w[...], preferred_element_type=jnp.float32) + b[...]

        # Bottleneck blocks: no activation inside the block, ReLU after the residual add
        # (matches the PyTorch forward exactly).
        for _ in range(n_bottlenecks):
            wA, bA, wB, bB = params[idx:idx + 4]
            idx += 4
            h = jnp.dot(x.astype(jnp.bfloat16), wA[...],
                        preferred_element_type=jnp.float32) + bA[...]
            h = jnp.dot(h.astype(jnp.bfloat16), wB[...],
                        preferred_element_type=jnp.float32) + bB[...]
            x = jnp.maximum(x + h, 0.0)          # relu(x + L2(L1(x)))

        # Output projection kept in f32 (tiny matrix) for tighter logits.
        w, b = params[idx], params[idx + 1]
        logits = jnp.dot(x, w[...], preferred_element_type=jnp.float32) + b[...]

        # Numerically-stable log_softmax over the valid lanes only.
        lane_idx = jax.lax.broadcasted_iota(jnp.int32, logits.shape, dimension=1)
        valid = lane_idx < out_valid
        masked = jnp.where(valid, logits, jnp.float32(-1e30))
        m = jnp.max(masked, axis=-1, keepdims=True)
        shifted = masked - m
        lse = jnp.log(jnp.sum(jnp.where(valid, jnp.exp(shifted), 0.0),
                              axis=-1, keepdims=True))
        o_ref[...] = (shifted - lse).astype(o_ref.dtype)

    return kernel


def fc_output_skip_forward(x, flat_params, n_bottlenecks, output_dim, *,
                           tile_b=512, out_dtype=jnp.float32):
    """Run the fused Pallas kernel.

    `flat_params` is the flat f32 list [w_in, b_in, (wA, bA, wB, bB)*n_blocks, w_out, b_out]
    with weights already (in_features, out_features) and biases (1, out_features).
    Lane padding to 128 multiples, bf16 casts (activations + hidden weights; final layer
    stays f32) and batch padding/tiling happen here.
    """
    batch, in_dim = x.shape
    n_params = len(flat_params)
    assert output_dim == flat_params[-1].shape[1]

    # --- pad feature dims to 128-lane multiples; hidden weights -> bf16, final layer +
    #     all biases stay f32 ---
    padded = []
    for i, p in enumerate(flat_params):
        if i % 2 == 0:  # weight (fan_in, fan_out)
            fi, fo = p.shape
            p = jnp.pad(p, ((0, _round_up(fi, LANE) - fi), (0, _round_up(fo, LANE) - fo)))
            is_last_weight = (i == n_params - 2)
            p = p.astype(jnp.float32 if is_last_weight else jnp.bfloat16)
        else:           # bias (1, fan_out)
            fo = p.shape[1]
            p = jnp.pad(p, ((0, 0), (0, _round_up(fo, LANE) - fo))).astype(jnp.float32)
        padded.append(p)

    in_pad = padded[0].shape[0]
    hid_pad = padded[0].shape[1]
    out_pad = padded[-1].shape[1]

    # --- pick the batch tile: large by default, 16-aligned (bf16 LHS packing), and with
    #     at least 2 grid steps whenever the batch allows (keeps both v7x TCs busy) ---
    tile_b = max(B_QUANT, _round_up(min(int(tile_b), batch), B_QUANT))
    if batch > B_QUANT:
        tile_b = min(tile_b, _round_up(pl.cdiv(batch, 2), B_QUANT))
    batch_pad = _round_up(batch, tile_b)
    grid = (batch_pad // tile_b,)

    # --- bf16 activation input stream (halves the dominant HBM read) ---
    x_p = jnp.pad(x, ((0, batch_pad - batch), (0, in_pad - in_dim))).astype(jnp.bfloat16)

    kernel = _make_kernel(n_bottlenecks, output_dim)
    weight_bytes = sum(int(p.size) * p.dtype.itemsize for p in padded)
    out_itemsize = jnp.dtype(out_dtype).itemsize
    phys_vmem = _vmem_capacity_bytes()

    def run(use_pipeline_mode):
        if use_pipeline_mode:
            # x: triple-buffered stream; weights/biases: constant index_map, single buffer.
            x_spec = pl.BlockSpec((tile_b, in_pad), lambda i: (i, 0),
                                  pipeline_mode=pl.Buffered(3))
            w_specs = [pl.BlockSpec(p.shape, lambda i: (0, 0),
                                    pipeline_mode=pl.Buffered(1)) for p in padded]
            w_buf, x_buf = 1, 3
        else:
            x_spec = pl.BlockSpec((tile_b, in_pad), lambda i: (i, 0))
            w_specs = [pl.BlockSpec(p.shape, lambda i: (0, 0)) for p in padded]
            w_buf, x_buf = 2, 2

        # VMEM budget: resident weights + buffered activation tiles + live f32 temporaries
        # + headroom; floor for compiler scratch, cap at 75% of this generation's VMEM.
        need = (w_buf * weight_bytes
                + x_buf * tile_b * in_pad * 2
                + 2 * tile_b * out_pad * out_itemsize
                + 6 * tile_b * max(in_pad, hid_pad, out_pad) * 4
                + (2 << 20))
        vmem_limit = int(min(max(need, 16 << 20), (phys_vmem * 3) // 4))

        return pl.pallas_call(
            kernel,
            out_shape=jax.ShapeDtypeStruct((batch_pad, out_pad), out_dtype),
            grid_spec=pltpu.PrefetchScalarGridSpec(
                num_scalar_prefetch=0,
                grid=grid,
                in_specs=[x_spec] + w_specs,
                out_specs=pl.BlockSpec((tile_b, out_pad), lambda i: (i, 0)),
            ),
            compiler_params=pltpu.CompilerParams(
                dimension_semantics=("parallel",),   # batch axis shards across TCs
                vmem_limit_bytes=vmem_limit,
            ),
        )(x_p, *padded)

    try:
        out_padded = run(True)
    except Exception:
        # pipeline_mode / Buffered not supported in this environment: fall back to the
        # default double-buffered BlockSpec pipeline (correct, slightly more VMEM).
        out_padded = run(False)

    return out_padded[:batch, :output_dim]


def init_params(key, n_layer, input_dim, hidden_dim, output_dim):
    """Deterministic init mimicking nn.Linear's U(-1/sqrt(fan_in), 1/sqrt(fan_in)).

    Returns a flat list [w_in, b_in, (wA, bA, wB, bB)*n_blocks, w_out, b_out] with weights
    transposed to (in_features, out_features) and biases shaped (1, out_features), all f32.
    """
    def linear(key, fan_in, fan_out):
        kw, kb = jax.random.split(key)
        bound = 1.0 / jnp.sqrt(float(fan_in))
        w = jax.random.uniform(kw, (fan_in, fan_out), jnp.float32, -bound, bound)
        b = jax.random.uniform(kb, (1, fan_out), jnp.float32, -bound, bound)
        return w, b

    n_blocks = len(range(0, n_layer - 2, 2))
    keys = jax.random.split(key, 2 + 2 * n_blocks)

    params = []
    params += list(linear(keys[0], input_dim, hidden_dim))
    for i in range(n_blocks):
        params += list(linear(keys[1 + 2 * i], hidden_dim, hidden_dim))
        params += list(linear(keys[2 + 2 * i], hidden_dim, hidden_dim))
    params += list(linear(keys[-1], hidden_dim, output_dim))
    return params, n_blocks


def reference_forward(x, flat_params, n_bottlenecks):
    """Pure-JAX f32 reference matching the PyTorch forward."""
    idx = 0
    w, b = flat_params[idx], flat_params[idx + 1]
    idx += 2
    h = x @ w + b
    for _ in range(n_bottlenecks):
        wA, bA, wB, bB = flat_params[idx:idx + 4]
        idx += 4
        t = (h @ wA + bA) @ wB + bB
        h = jax.nn.relu(h + t)
    w, b = flat_params[idx], flat_params[idx + 1]
    h = h @ w + b
    return jax.nn.log_softmax(h, axis=-1)


if __name__ == "__main__":
    # Small shapes consistent with the module: n_layer=4 -> one Bottleneck block.
    n_layer, input_dim, hidden_dim, output_dim = 4, 32, 64, 16
    batch = 32

    key = jax.random.PRNGKey(0)
    k_x, k_p = jax.random.split(key)
    x = jax.random.normal(k_x, (batch, input_dim), jnp.float32)

    flat_params, n_blocks = init_params(k_p, n_layer, input_dim, hidden_dim, output_dim)

    # Default (large) tile_b requested; the wrapper auto-shrinks it to 16 here so the grid
    # still has 2 pipelined steps even at this tiny batch.
    out = fc_output_skip_forward(x, flat_params, n_blocks, output_dim)
    out = jax.block_until_ready(out)

    ref = reference_forward(x, flat_params, n_blocks)
    assert out.shape == (batch, output_dim)
    # bf16 activations/hidden weights with f32 accumulation -> looser tolerance vs pure-f32.
    assert jnp.allclose(out, ref, atol=5e-2, rtol=5e-2), "Pallas kernel mismatch vs JAX reference"

    print("KERNEL_OK")
</pallas_src>

<mosaic_0001>
module attributes {stable_mosaic.version = 11 : i64} {
  func.func @kernel(%arg0: i32, %arg1: memref<16x128xbf16, #tpu.memory_space<vmem>>, %arg2: memref<128x128xbf16, #tpu.memory_space<vmem>>, %arg3: memref<1x128xf32, #tpu.memory_space<vmem>>, %arg4: memref<128x128xbf16, #tpu.memory_space<vmem>>, %arg5: memref<1x128xf32, #tpu.memory_space<vmem>>, %arg6: memref<128x128xbf16, #tpu.memory_space<vmem>>, %arg7: memref<1x128xf32, #tpu.memory_space<vmem>>, %arg8: memref<128x128xf32, #tpu.memory_space<vmem>>, %arg9: memref<1x128xf32, #tpu.memory_space<vmem>>, %arg10: memref<16x128xf32, #tpu.memory_space<vmem>>) attributes {dimension_semantics = [#tpu.dimension_semantics<parallel>], iteration_bounds = array<i64: 2>, scalar_prefetch = 0 : i64, scratch_operands = 0 : i64, tpu.core_type = #tpu.core_type<tc>, window_params = [{transform_indices = @transform_0, window_bounds = array<i64: 16, 128>}, {pipeline_mode = #tpu.pipeline_mode<synchronous>, transform_indices = @transform_1, window_bounds = array<i64: 128, 128>}, {pipeline_mode = #tpu.pipeline_mode<synchronous>, transform_indices = @transform_2, window_bounds = array<i64: 1, 128>}, {pipeline_mode = #tpu.pipeline_mode<synchronous>, transform_indices = @transform_3, window_bounds = array<i64: 128, 128>}, {pipeline_mode = #tpu.pipeline_mode<synchronous>, transform_indices = @transform_4, window_bounds = array<i64: 1, 128>}, {pipeline_mode = #tpu.pipeline_mode<synchronous>, transform_indices = @transform_5, window_bounds = array<i64: 128, 128>}, {pipeline_mode = #tpu.pipeline_mode<synchronous>, transform_indices = @transform_6, window_bounds = array<i64: 1, 128>}, {pipeline_mode = #tpu.pipeline_mode<synchronous>, transform_indices = @transform_7, window_bounds = array<i64: 128, 128>}, {pipeline_mode = #tpu.pipeline_mode<synchronous>, transform_indices = @transform_8, window_bounds = array<i64: 1, 128>}, {transform_indices = @transform_9, window_bounds = array<i64: 16, 128>}]} {
    %c0 = arith.constant 0 : index
    %c0_0 = arith.constant 0 : index
    %0 = vector.load %arg1[%c0, %c0_0] : memref<16x128xbf16, #tpu.memory_space<vmem>>, vector<16x128xbf16>
    %c0_1 = arith.constant 0 : index
    %c0_2 = arith.constant 0 : index
    %1 = vector.load %arg2[%c0_1, %c0_2] : memref<128x128xbf16, #tpu.memory_space<vmem>>, vector<128x128xbf16>
    %cst = arith.constant dense<0.000000e+00> : vector<16x128xf32>
    %2 = tpu.matmul %0, %1, %cst {dimension_numbers = #tpu.dot_dimension_numbers<[1], [0], [0], [1], [0, 0, 1, 1], [], []>} : vector<16x128xbf16>, vector<128x128xbf16>, vector<16x128xf32> -> vector<16x128xf32>
    %c0_3 = arith.constant 0 : index
    %c0_4 = arith.constant 0 : index
    %3 = vector.load %arg3[%c0_3, %c0_4] : memref<1x128xf32, #tpu.memory_space<vmem>>, vector<1x128xf32>
    %4 = vector.broadcast %3 : vector<1x128xf32> to vector<16x128xf32>
    %5 = arith.addf %2, %4 : vector<16x128xf32>
    %6 = arith.truncf %5 : vector<16x128xf32> to vector<16x128xbf16>
    %c0_5 = arith.constant 0 : index
    %c0_6 = arith.constant 0 : index
    %7 = vector.load %arg4[%c0_5, %c0_6] : memref<128x128xbf16, #tpu.memory_space<vmem>>, vector<128x128xbf16>
    %cst_7 = arith.constant dense<0.000000e+00> : vector<16x128xf32>
    %8 = tpu.matmul %6, %7, %cst_7 {dimension_numbers = #tpu.dot_dimension_numbers<[1], [0], [0], [1], [0, 0, 1, 1], [], []>} : vector<16x128xbf16>, vector<128x128xbf16>, vector<16x128xf32> -> vector<16x128xf32>
    %c0_8 = arith.constant 0 : index
    %c0_9 = arith.constant 0 : index
    %9 = vector.load %arg5[%c0_8, %c0_9] : memref<1x128xf32, #tpu.memory_space<vmem>>, vector<1x128xf32>
    %10 = vector.broadcast %9 : vector<1x128xf32> to vector<16x128xf32>
    %11 = arith.addf %8, %10 : vector<16x128xf32>
    %12 = arith.truncf %11 : vector<16x128xf32> to vector<16x128xbf16>
    %c0_10 = arith.constant 0 : index
    %c0_11 = arith.constant 0 : index
    %13 = vector.load %arg6[%c0_10, %c0_11] : memref<128x128xbf16, #tpu.memory_space<vmem>>, vector<128x128xbf16>
    %cst_12 = arith.constant dense<0.000000e+00> : vector<16x128xf32>
    %14 = tpu.matmul %12, %13, %cst_12 {dimension_numbers = #tpu.dot_dimension_numbers<[1], [0], [0], [1], [0, 0, 1, 1], [], []>} : vector<16x128xbf16>, vector<128x128xbf16>, vector<16x128xf32> -> vector<16x128xf32>
    %c0_13 = arith.constant 0 : index
    %c0_14 = arith.constant 0 : index
    %15 = vector.load %arg7[%c0_13, %c0_14] : memref<1x128xf32, #tpu.memory_space<vmem>>, vector<1x128xf32>
    %16 = vector.broadcast %15 : vector<1x128xf32> to vector<16x128xf32>
    %17 = arith.addf %14, %16 : vector<16x128xf32>
    %18 = arith.addf %5, %17 : vector<16x128xf32>
    %cst_15 = arith.constant 0.000000e+00 : f32
    %19 = vector.broadcast %cst_15 : f32 to vector<16x128xf32>
    %20 = arith.maximumf %18, %19 : vector<16x128xf32>
    %c0_16 = arith.constant 0 : index
    %c0_17 = arith.constant 0 : index
    %21 = vector.load %arg8[%c0_16, %c0_17] : memref<128x128xf32, #tpu.memory_space<vmem>>, vector<128x128xf32>
    %cst_18 = arith.constant dense<0.000000e+00> : vector<16x128xf32>
    %22 = tpu.matmul %20, %21, %cst_18 {dimension_numbers = #tpu.dot_dimension_numbers<[1], [0], [0], [1], [0, 0, 1, 1], [], []>} : vector<16x128xf32>, vector<128x128xf32>, vector<16x128xf32> -> vector<16x128xf32>
    %c0_19 = arith.constant 0 : index
    %c0_20 = arith.constant 0 : index
    %23 = vector.load %arg9[%c0_19, %c0_20] : memref<1x128xf32, #tpu.memory_space<vmem>>, vector<1x128xf32>
    %24 = vector.broadcast %23 : vector<1x128xf32> to vector<16x128xf32>
    %25 = arith.addf %22, %24 : vector<16x128xf32>
    %26 = tpu.iota {dimensions = array<i32: 1>} : vector<16x128xi32>
    %c16_i32 = arith.constant 16 : i32
    %27 = vector.broadcast %c16_i32 : i32 to vector<16x128xi32>
    %28 = arith.cmpi slt, %26, %27 : vector<16x128xi32>
    %cst_21 = arith.constant -1.000000e+30 : f32
    %29 = vector.broadcast %cst_21 : f32 to vector<16x128xf32>
    %30 = arith.select %28, %25, %29 : vector<16x128xi1>, vector<16x128xf32>
    %cst_22 = arith.constant dense<0xFF800000> : vector<16xf32>
    %31 = vector.multi_reduction <maximumf>, %30, %cst_22 [1] : vector<16x128xf32> to vector<16xf32>
    %32 = vector.shape_cast %31 : vector<16xf32> to vector<16x1xf32>
    %33 = vector.broadcast %32 : vector<16x1xf32> to vector<16x128xf32>
    %34 = arith.subf %30, %33 : vector<16x128xf32>
    %35 = math.exp %34 : vector<16x128xf32>
    %cst_23 = arith.constant 0.000000e+00 : f32
    %36 = vector.broadcast %cst_23 : f32 to vector<16x128xf32>
    %37 = arith.select %28, %35, %36 : vector<16x128xi1>, vector<16x128xf32>
    %cst_24 = arith.constant dense<0.000000e+00> : vector<16xf32>
    %38 = vector.multi_reduction <add>, %37, %cst_24 [1] : vector<16x128xf32> to vector<16xf32>
    %39 = vector.shape_cast %38 : vector<16xf32> to vector<16x1xf32>
    %40 = math.log %39 : vector<16x1xf32>
    %41 = vector.broadcast %40 : vector<16x1xf32> to vector<16x128xf32>
    %42 = arith.subf %34, %41 : vector<16x128xf32>
    %c0_25 = arith.constant 0 : index
    %c0_26 = arith.constant 0 : index
    %43 = vector.load %arg10[%c0_25, %c0_26] : memref<16x128xf32, #tpu.memory_space<vmem>>, vector<16x128xf32>
    tpu.vector_store %arg10[%c0_25, %c0_26], %42 {strides = array<i32>} : memref<16x128xf32, #tpu.memory_space<vmem>>, vector<16x128xf32>,
    return
  }
  func.func @transform_0(%arg0: i32) -> (i32, i32) {
    %c0_i32 = arith.constant 0 : i32
    %c0_i32_0 = arith.constant 0 : i32
    return %arg0, %c0_i32 : i32, i32
  }
  func.func @transform_1(%arg0: i32) -> (i32, i32) {
    %c0_i32 = arith.constant 0 : i32
    %c0_i32_0 = arith.constant 0 : i32
    %c0_i32_1 = arith.constant 0 : i32
    return %c0_i32, %c0_i32_0 : i32, i32
  }
  func.func @transform_2(%arg0: i32) -> (i32, i32) {
    %c0_i32 = arith.constant 0 : i32
    %c0_i32_0 = arith.constant 0 : i32
    %c0_i32_1 = arith.constant 0 : i32
    return %c0_i32, %c0_i32_0 : i32, i32
  }
  func.func @transform_3(%arg0: i32) -> (i32, i32) {
    %c0_i32 = arith.constant 0 : i32
    %c0_i32_0 = arith.constant 0 : i32
    %c0_i32_1 = arith.constant 0 : i32
    return %c0_i32, %c0_i32_0 : i32, i32
  }
  func.func @transform_4(%arg0: i32) -> (i32, i32) {
    %c0_i32 = arith.constant 0 : i32
    %c0_i32_0 = arith.constant 0 : i32
    %c0_i32_1 = arith.constant 0 : i32
    return %c0_i32, %c0_i32_0 : i32, i32
  }
  func.func @transform_5(%arg0: i32) -> (i32, i32) {
    %c0_i32 = arith.constant 0 : i32
    %c0_i32_0 = arith.constant 0 : i32
    %c0_i32_1 = arith.constant 0 : i32
    return %c0_i32, %c0_i32_0 : i32, i32
  }
  func.func @transform_6(%arg0: i32) -> (i32, i32) {
    %c0_i32 = arith.constant 0 : i32
    %c0_i32_0 = arith.constant 0 : i32
    %c0_i32_1 = arith.constant 0 : i32
    return %c0_i32, %c0_i32_0 : i32, i32
  }
  func.func @transform_7(%arg0: i32) -> (i32, i32) {
    %c0_i32 = arith.constant 0 : i32
    %c0_i32_0 = arith.constant 0 : i32
    %c0_i32_1 = arith.constant 0 : i32
    return %c0_i32, %c0_i32_0 : i32, i32
  }
  func.func @transform_8(%arg0: i32) -> (i32, i32) {
    %c0_i32 = arith.constant 0 : i32
    %c0_i32_0 = arith.constant 0 : i32
    %c0_i32_1 = arith.constant 0 : i32
    return %c0_i32, %c0_i32_0 : i32, i32
  }
  func.func @transform_9(%arg0: i32) -> (i32, i32) {
    %c0_i32 = arith.constant 0 : i32
    %c0_i32_0 = arith.constant 0 : i32
    return %arg0, %c0_i32 : i32, i32
  }
}

</mosaic_0001>

<llo_original>
// kernel: tpu_custom_call.1
$region0: #{tpu_custom_call.1}
  #allocation0 [shape = 'u32[]', space=smem, size = 0x4, offset = 0x4, fixed_abs, tag = 'smem constant byte address 0x4 - core index']
  #allocation1 [shape = 'u32[144,128]{1,0:T(1,128)}', space=vmem, size = 0x12000, scoped, tag = 'internal scratch']
  %s0 = inlined_call_operand.hbm [shape: bf16[32,128], index: 0, kind: input, shape index: {}]
  %s1 = inlined_call_operand.hbm [shape: bf16[128,128], index: 1, kind: input, shape index: {}]
  %s2 = inlined_call_operand.vmem [shape: f32[1,128], index: 2, kind: input, shape index: {}]
  %s3 = inlined_call_operand.hbm [shape: bf16[128,128], index: 3, kind: input, shape index: {}]
  %s4 = inlined_call_operand.vmem [shape: f32[1,128], index: 4, kind: input, shape index: {}]
  %s5 = inlined_call_operand.hbm [shape: bf16[128,128], index: 5, kind: input, shape index: {}]
  %s6 = inlined_call_operand.vmem [shape: f32[1,128], index: 6, kind: input, shape index: {}]
  %s7 = inlined_call_operand.hbm [shape: f32[128,128], index: 7, kind: input, shape index: {}]
  %s8 = inlined_call_operand.vmem [shape: f32[1,128], index: 8, kind: input, shape index: {}]
  %s9 = inlined_call_operand.hbm [shape: f32[32,128], index: 9, kind: output, shape index: {}]
  %s10 = sld [smem:[#allocation0]]
  $region89: #{tpu_custom_call.1} parent=0
    _
  %s12 = ssub.s32 1, %s10
  %s13 = scalar_select 0, %s12, %s10
  $region1: #{tpu_custom_call.1} parent=0
    #allocation2 [shape = 'u8[8192]{0}', space=vmem, size = 0x2000, scoped, tag = 'input window, operand 0']
    #allocation3 [shape = 's32[2]{0}', space=sflag, size = 0x8, scoped, tag = 'scoped memory for tpu_custom_call.1']
    #allocation4 [shape = 's32[2]{0}', space=sflag, size = 0x8, scoped, tag = 'scoped memory for tpu_custom_call.1']
    #allocation5 [shape = 'u8[32768]{0}', space=vmem, size = 0x8000, scoped, tag = 'input window, operand 1, single buffered']
    #allocation6 [shape = 's32[1]{0}', space=sflag, size = 0x4, scoped, tag = 'scoped memory for tpu_custom_call.1']
    #allocation7 [shape = 'u8[32768]{0}', space=vmem, size = 0x8000, scoped, tag = 'input window, operand 3, single buffered']
    #allocation8 [shape = 'u8[32768]{0}', space=vmem, size = 0x8000, scoped, tag = 'input window, operand 5, single buffered']
    #allocation9 [shape = 's32[1]{0}', space=sflag, size = 0x4, scoped, tag = 'scoped memory for tpu_custom_call.1']
    #allocation10 [shape = 'u8[65536]{0}', space=vmem, size = 0x10000, scoped, tag = 'input window, operand 7, single buffered']
    #allocation11 [shape = 'u8[16384]{0}', space=vmem, size = 0x4000, scoped, tag = 'output window, operand 0']
    %14 = vsyncpa [#allocation3], 0
    %s15 = scalar_lea.sflag [#allocation3], 1
    %16 = vsyncpa %s15, 0
    %17 = vsyncpa [#allocation6], 0
    %18 = vsyncpa [#allocation9], 0
    %19 = vsyncpa [#allocation4], 0
    %s20 = scalar_lea.sflag [#allocation4], 1
    %21 = vsyncpa %s20, 0
    loop: start=0, step=1, limit=4
    $region2: #{tpu_custom_call.1} parent=1 // loop_pre_header
      _
    $region3: #{tpu_custom_call.1} parent=1 // loop_header
      %s23 = sphi 0, %s27
      %p24 = scmp.ge.s32.totalorder %s23, 4
      %s33 = sphi 0, %s35
      %s36 = sphi 0, %s33
      %s37 = sphi 0, %s36
      %s53 = sphi 0, %s37
      %s57 = sphi 0, %s57
      %s59 = sphi 0, %s57
      %s60 = sphi 0, %s59
      %s74 = sphi 0, %s60
      %s78 = sphi 0, %s78
      %s80 = sphi 0, %s78
      %s81 = sphi 0, %s80
      %s95 = sphi 0, %s81
      %s99 = sphi 0, %s99
      %s101 = sphi 0, %s99
      %s102 = sphi 0, %s101
      %s116 = sphi 0, %s102
      %s120 = sphi 0, %s120
      %s122 = sphi 0, %s120
      %s123 = sphi 0, %s122
      %s137 = sphi 0, %s123
      %s141 = sphi 0, %s141
      %s143 = sphi 0, %s141
      %s144 = sphi 0, %s143
      %s158 = sphi 0, %s144
      %s162 = sphi 0, %s162
      %s164 = sphi 0, %s162
      %s165 = sphi 0, %s164
      %s179 = sphi 0, %s165
      %s183 = sphi 0, %s183
      %s185 = sphi 0, %s183
      %s186 = sphi 0, %s185
      %s200 = sphi 0, %s186
      %s204 = sphi 0, %s204
      %s206 = sphi 0, %s204
      %s207 = sphi 0, %s206
      %s221 = sphi 0, %s207
      %s227 = sphi 0, %s229
      %s230 = sphi 0, %s227
      %s231 = sphi 0, %s230
      %s247 = sphi 0, %s231
    $region4: #{tpu_custom_call.1} parent=1 // loop_header_branch
      %26 = sbr.rel (%p24) target = $region8
    $region5: #{tpu_custom_call.1} parent=1 // loop_body
      %s28 = ssub.s32 %s23, 1
      %s29 = ssub.s32 %s23, 2
      %s30 = sadd.s32 %s23, 1
      %s31 = ssub.s32 %s23, %s30
      %p32 = scmp.eq.s32.totalorder %s31, 0
      %s34 = sadd.s32 %s33, 1
      %s35 = scalar_select %p32, %s33, %s34
      %p38 = pneg %p32
      %p39 = scmp.eq.s32.totalorder %s23, 1
      %p40 = por %p38, %p39
      %p41 = scmp.ne.s32.totalorder %s33, %s36
      %p42 = scmp.eq.s32.totalorder %s23, 0
      %p43 = por %p41, %p42
      %p44 = scmp.ne.s32.totalorder %s33, %s36
      %p45 = scmp.eq.s32.totalorder %s28, 1
      %p46 = por %p44, %p45
      %p47 = scmp.ne.s32.totalorder %s36, %s37
      %p48 = scmp.eq.s32.totalorder %s28, 0
      %p49 = por %p47, %p48
      %p50 = scmp.ne.s32.totalorder %s36, %s37
      %p51 = scmp.eq.s32.totalorder %s29, 1
      %p52 = por %p50, %p51
      %p54 = scmp.ne.s32.totalorder %s37, %s53
      %p55 = scmp.eq.s32.totalorder %s29, 0
      %p56 = por %p54, %p55
      %s58 = sadd.s32 %s57, 1
      %p61 = scmp.eq.s32.totalorder %s23, 1
      %p62 = scmp.ne.s32.totalorder %s57, %s59
      %p63 = scmp.eq.s32.totalorder %s23, 0
      %p64 = por %p62, %p63
      %p65 = scmp.ne.s32.totalorder %s57, %s59
      %p66 = scmp.eq.s32.totalorder %s28, 1
      %p67 = por %p65, %p66
      %p68 = scmp.ne.s32.totalorder %s59, %s60
      %p69 = scmp.eq.s32.totalorder %s28, 0
      %p70 = por %p68, %p69
      %p71 = scmp.ne.s32.totalorder %s59, %s60
      %p72 = scmp.eq.s32.totalorder %s29, 1
      %p73 = por %p71, %p72
      %p75 = scmp.ne.s32.totalorder %s60, %s74
      %p76 = scmp.eq.s32.totalorder %s29, 0
      %p77 = por %p75, %p76
      %s79 = sadd.s32 %s78, 1
      %p82 = scmp.eq.s32.totalorder %s23, 1
      %p83 = scmp.ne.s32.totalorder %s78, %s80
      %p84 = scmp.eq.s32.totalorder %s23, 0
      %p85 = por %p83, %p84
      %p86 = scmp.ne.s32.totalorder %s78, %s80
      %p87 = scmp.eq.s32.totalorder %s28, 1
      %p88 = por %p86, %p87
      %p89 = scmp.ne.s32.totalorder %s80, %s81
      %p90 = scmp.eq.s32.totalorder %s28, 0
      %p91 = por %p89, %p90
      %p92 = scmp.ne.s32.totalorder %s80, %s81
      %p93 = scmp.eq.s32.totalorder %s29, 1
      %p94 = por %p92, %p93
      %p96 = scmp.ne.s32.totalorder %s81, %s95
      %p97 = scmp.eq.s32.totalorder %s29, 0
      %p98 = por %p96, %p97
      %s100 = sadd.s32 %s99, 1
      %p103 = scmp.eq.s32.totalorder %s23, 1
      %p104 = scmp.ne.s32.totalorder %s99, %s101
      %p105 = scmp.eq.s32.totalorder %s23, 0
      %p106 = por %p104, %p105
      %p107 = scmp.ne.s32.totalorder %s99, %s101
      %p108 = scmp.eq.s32.totalorder %s28, 1
      %p109 = por %p107, %p108
      %p110 = scmp.ne.s32.totalorder %s101, %s102
      %p111 = scmp.eq.s32.totalorder %s28, 0
      %p112 = por %p110, %p111
      %p113 = scmp.ne.s32.totalorder %s101, %s102
      %p114 = scmp.eq.s32.totalorder %s29, 1
      %p115 = por %p113, %p114
      %p117 = scmp.ne.s32.totalorder %s102, %s116
      %p118 = scmp.eq.s32.totalorder %s29, 0
      %p119 = por %p117, %p118
      %s121 = sadd.s32 %s120, 1
      %p124 = scmp.eq.s32.totalorder %s23, 1
      %p125 = scmp.ne.s32.totalorder %s120, %s122
      %p126 = scmp.eq.s32.totalorder %s23, 0
      %p127 = por %p125, %p126
      %p128 = scmp.ne.s32.totalorder %s120, %s122
      %p129 = scmp.eq.s32.totalorder %s28, 1
      %p130 = por %p128, %p129
      %p131 = scmp.ne.s32.totalorder %s122, %s123
      %p132 = scmp.eq.s32.totalorder %s28, 0
      %p133 = por %p131, %p132
      %p134 = scmp.ne.s32.totalorder %s122, %s123
      %p135 = scmp.eq.s32.totalorder %s29, 1
      %p136 = por %p134, %p135
      %p138 = scmp.ne.s32.totalorder %s123, %s137
      %p139 = scmp.eq.s32.totalorder %s29, 0
      %p140 = por %p138, %p139
      %s142 = sadd.s32 %s141, 1
      %p145 = scmp.eq.s32.totalorder %s23, 1
      %p146 = scmp.ne.s32.totalorder %s141, %s143
      %p147 = scmp.eq.s32.totalorder %s23, 0
      %p148 = por %p146, %p147
      %p149 = scmp.ne.s32.totalorder %s141, %s143
      %p150 = scmp.eq.s32.totalorder %s28, 1
      %p151 = por %p149, %p150
      %p152 = scmp.ne.s32.totalorder %s143, %s144
      %p153 = scmp.eq.s32.totalorder %s28, 0
      %p154 = por %p152, %p153
      %p155 = scmp.ne.s32.totalorder %s143, %s144
      %p156 = scmp.eq.s32.totalorder %s29, 1
      %p157 = por %p155, %p156
      %p159 = scmp.ne.s32.totalorder %s144, %s158
      %p160 = scmp.eq.s32.totalorder %s29, 0
      %p161 = por %p159, %p160
      %s163 = sadd.s32 %s162, 1
      %p166 = scmp.eq.s32.totalorder %s23, 1
      %p167 = scmp.ne.s32.totalorder %s162, %s164
      %p168 = scmp.eq.s32.totalorder %s23, 0
      %p169 = por %p167, %p168
      %p170 = scmp.ne.s32.totalorder %s162, %s164
      %p171 = scmp.eq.s32.totalorder %s28, 1
      %p172 = por %p170, %p171
      %p173 = scmp.ne.s32.totalorder %s164, %s165
      %p174 = scmp.eq.s32.totalorder %s28, 0
      %p175 = por %p173, %p174
      %p176 = scmp.ne.s32.totalorder %s164, %s165
      %p177 = scmp.eq.s32.totalorder %s29, 1
      %p178 = por %p176, %p177
      %p180 = scmp.ne.s32.totalorder %s165, %s179
      %p181 = scmp.eq.s32.totalorder %s29, 0
      %p182 = por %p180, %p181
      %s184 = sadd.s32 %s183, 1
      %p187 = scmp.eq.s32.totalorder %s23, 1
      %p188 = scmp.ne.s32.totalorder %s183, %s185
      %p189 = scmp.eq.s32.totalorder %s23, 0
      %p190 = por %p188, %p189
      %p191 = scmp.ne.s32.totalorder %s183, %s185
      %p192 = scmp.eq.s32.totalorder %s28, 1
      %p193 = por %p191, %p192
      %p194 = scmp.ne.s32.totalorder %s185, %s186
      %p195 = scmp.eq.s32.totalorder %s28, 0
      %p196 = por %p194, %p195
      %p197 = scmp.ne.s32.totalorder %s185, %s186
      %p198 = scmp.eq.s32.totalorder %s29, 1
      %p199 = por %p197, %p198
      %p201 = scmp.ne.s32.totalorder %s186, %s200
      %p202 = scmp.eq.s32.totalorder %s29, 0
      %p203 = por %p201, %p202
      %s205 = sadd.s32 %s204, 1
      %p208 = scmp.eq.s32.totalorder %s23, 1
      %p209 = scmp.ne.s32.totalorder %s204, %s206
      %p210 = scmp.eq.s32.totalorder %s23, 0
      %p211 = por %p209, %p210
      %p212 = scmp.ne.s32.totalorder %s204, %s206
      %p213 = scmp.eq.s32.totalorder %s28, 1
      %p214 = por %p212, %p213
      %p215 = scmp.ne.s32.totalorder %s206, %s207
      %p216 = scmp.eq.s32.totalorder %s28, 0
      %p217 = por %p215, %p216
      %p218 = scmp.ne.s32.totalorder %s206, %s207
      %p219 = scmp.eq.s32.totalorder %s29, 1
      %p220 = por %p218, %p219
      %p222 = scmp.ne.s32.totalorder %s207, %s221
      %p223 = scmp.eq.s32.totalorder %s29, 0
      %p224 = por %p222, %p223
      %s225 = ssub.s32 %s23, %s30
      %p226 = scmp.eq.s32.totalorder %s225, 0
      %s228 = sadd.s32 %s227, 1
      %s229 = scalar_select %p226, %s227, %s228
      %p232 = pneg %p226
      %p233 = scmp.eq.s32.totalorder %s23, 1
      %p234 = por %p232, %p233
      %p235 = scmp.ne.s32.totalorder %s227, %s230
      %p236 = scmp.eq.s32.totalorder %s23, 0
      %p237 = por %p235, %p236
      %p238 = scmp.ne.s32.totalorder %s227, %s230
      %p239 = scmp.eq.s32.totalorder %s28, 1
      %p240 = por %p238, %p239
      %p241 = scmp.ne.s32.totalorder %s230, %s231
      %p242 = scmp.eq.s32.totalorder %s28, 0
      %p243 = por %p241, %p242
      %p244 = scmp.ne.s32.totalorder %s230, %s231
      %p245 = scmp.eq.s32.totalorder %s29, 1
      %p246 = por %p244, %p245
      %p248 = scmp.ne.s32.totalorder %s231, %s247
      %p249 = scmp.eq.s32.totalorder %s29, 0
      %p250 = por %p248, %p249
      %p251 = scmp.le.s32.totalorder 1, %s23
      %p252 = scmp.lt.s32.totalorder %s23, 3
      %p253 = pnand %p251, %p252
      %p254 = pneg %p253
      // Predicated region
      $region9: #{tpu_custom_call.1} parent=5 // pred_check
        _
      $region10: #{tpu_custom_call.1} parent=5 // pred_check_branch
        %256 = sbr.rel (%p253) target = $region12
      $region11: #{tpu_custom_call.1} parent=5 // pred_region
        %s257 = ssub.s32 %s23, 1
        // Predicated region
        $region13: #{tpu_custom_call.1} parent=11 // pred_check
          %p258 = pneg %p70
        $region14: #{tpu_custom_call.1} parent=11 // pred_check_branch
          %260 = sbr.rel (%p258) target = $region16
        $region15: #{tpu_custom_call.1} parent=11 // pred_region
          %s262 = ssub.s32 1024, 1024
          %263 = vsyncadd [#allocation6], %s262
          %s264 = sshll.u32 [#allocation5], 4
          %s265 = int_to_ptr.vmem [resolvable:$true] %s264
          %270 = dma.hbm_to_vmem [thread:$0]  %s1, 1024, %s265, [#allocation6], 64, 64, 4
        $region16: #{tpu_custom_call.1} parent=11 // pred_fallthru
          _
        // Predicated region
        $region17: #{tpu_custom_call.1} parent=11 // pred_check
          %p271 = pneg %p91
        $region18: #{tpu_custom_call.1} parent=11 // pred_check_branch
          %273 = sbr.rel (%p271) target = $region20
        $region19: #{tpu_custom_call.1} parent=11 // pred_region
          _
        $region20: #{tpu_custom_call.1} parent=11 // pred_fallthru
          _
        // Predicated region
        $region21: #{tpu_custom_call.1} parent=11 // pred_check
          %p274 = pneg %p112
        $region22: #{tpu_custom_call.1} parent=11 // pred_check_branch
          %276 = sbr.rel (%p274) target = $region24
        $region23: #{tpu_custom_call.1} parent=11 // pred_region
          %s278 = ssub.s32 1024, 1024
          %279 = vsyncadd [#allocation6], %s278
          %s280 = sshll.u32 [#allocation7], 4
          %s281 = int_to_ptr.vmem [resolvable:$true] %s280
          %286 = dma.hbm_to_vmem [thread:$0]  %s3, 1024, %s281, [#allocation6], 64, 64, 4
        $region24: #{tpu_custom_call.1} parent=11 // pred_fallthru
          _
        // Predicated region
        $region25: #{tpu_custom_call.1} parent=11 // pred_check
          %p287 = pneg %p133
        $region26: #{tpu_custom_call.1} parent=11 // pred_check_branch
          %289 = sbr.rel (%p287) target = $region28
        $region27: #{tpu_custom_call.1} parent=11 // pred_region
          _
        $region28: #{tpu_custom_call.1} parent=11 // pred_fallthru
          _
        // Predicated region
        $region29: #{tpu_custom_call.1} parent=11 // pred_check
          %p290 = pneg %p154
        $region30: #{tpu_custom_call.1} parent=11 // pred_check_branch
          %292 = sbr.rel (%p290) target = $region32
        $region31: #{tpu_custom_call.1} parent=11 // pred_region
          %s294 = ssub.s32 1024, 1024
          %295 = vsyncadd [#allocation9], %s294
          %s296 = sshll.u32 [#allocation8], 4
          %s297 = int_to_ptr.vmem [resolvable:$true] %s296
          %302 = dma.hbm_to_vmem [thread:$0]  %s5, 1024, %s297, [#allocation9], 64, 64, 4
        $region32: #{tpu_custom_call.1} parent=11 // pred_fallthru
          _
        // Predicated region
        $region33: #{tpu_custom_call.1} parent=11 // pred_check
          %p303 = pneg %p175
        $region34: #{tpu_custom_call.1} parent=11 // pred_check_branch
          %305 = sbr.rel (%p303) target = $region36
        $region35: #{tpu_custom_call.1} parent=11 // pred_region
          _
        $region36: #{tpu_custom_call.1} parent=11 // pred_fallthru
          _
        // Predicated region
        $region37: #{tpu_custom_call.1} parent=11 // pred_check
          %p306 = pneg %p196
        $region38: #{tpu_custom_call.1} parent=11 // pred_check_branch
          %308 = sbr.rel (%p306) target = $region40
        $region39: #{tpu_custom_call.1} parent=11 // pred_region
          %s310 = ssub.s32 2048, 2048
          %311 = vsyncadd [#allocation9], %s310
          %s312 = sshll.u32 [#allocation10], 4
          %s313 = int_to_ptr.vmem [resolvable:$true] %s312
          %318 = dma.hbm_to_vmem [thread:$0]  %s7, 2048, %s313, [#allocation9], 128, 128, 8
        $region40: #{tpu_custom_call.1} parent=11 // pred_fallthru
          _
        // Predicated region
        $region41: #{tpu_custom_call.1} parent=11 // pred_check
          %p319 = pneg %p217
        $region42: #{tpu_custom_call.1} parent=11 // pred_check_branch
          %321 = sbr.rel (%p319) target = $region44
        $region43: #{tpu_custom_call.1} parent=11 // pred_region
          _
        $region44: #{tpu_custom_call.1} parent=11 // pred_fallthru
          _
      $region12: #{tpu_custom_call.1} parent=5 // pred_fallthru
        _
      %p322 = scmp.lt.s32.totalorder %s23, 2
      // Predicated region
      $region45: #{tpu_custom_call.1} parent=5 // pred_check
        %p323 = pneg %p322
      $region46: #{tpu_custom_call.1} parent=5 // pred_check_branch
        %325 = sbr.rel (%p323) target = $region48
      $region47: #{tpu_custom_call.1} parent=5 // pred_region
        // Predicated region
        $region49: #{tpu_custom_call.1} parent=47 // pred_check
          %p326 = pneg %p43
        $region50: #{tpu_custom_call.1} parent=47 // pred_check_branch
          %328 = sbr.rel (%p326) target = $region52
        $region51: #{tpu_custom_call.1} parent=47 // pred_region
          %s329 = sand.u32 %s33, 1
          %s330 = scalar_lea.sflag [#allocation3], %s329
          %s331 = sand.u32 %s33, 1
          %s332 = smul.addr %s331, 8
          %s333 = scalar_lea.vmem [#allocation2], %s332
          %s334 = smul.u32 2, %s23
          %s336 = ssub.s32 128, 128
          %337 = vsyncadd %s330, %s336
          %s338 = smul.addr %s334, 64
          %s339 = scalar_lea.hbm %s0, %s338
          %s340 = sshll.u32 %s333, 4
          %s341 = int_to_ptr.vmem [resolvable:$true] %s340
          %346 = dma.hbm_to_vmem [thread:$0]  %s339, 128, %s341, %s330, 64, 64, 4
        $region52: #{tpu_custom_call.1} parent=47 // pred_fallthru
          _
      $region48: #{tpu_custom_call.1} parent=5 // pred_fallthru
        _
      %p347 = scmp.le.s32.totalorder 1, %s23
      %p348 = scmp.lt.s32.totalorder %s23, 3
      %p349 = pnand %p347, %p348
      %p350 = pneg %p349
      // Predicated region
      $region53: #{tpu_custom_call.1} parent=5 // pred_check
        _
      $region54: #{tpu_custom_call.1} parent=5 // pred_check_branch
        %352 = sbr.rel (%p349) target = $region56
      $region55: #{tpu_custom_call.1} parent=5 // pred_region
        %s353 = ssub.s32 %s23, 1
        %s354 = sand.u32 %s36, 1
        %s355 = scalar_lea.sflag [#allocation3], %s354
        %s356 = sand.u32 %s36, 1
        %s357 = smul.addr %s356, 8
        %s358 = scalar_lea.vmem [#allocation2], %s357
        // Predicated region
        $region57: #{tpu_custom_call.1} parent=55 // pred_check
          %p359 = pneg %p49
        $region58: #{tpu_custom_call.1} parent=55 // pred_check_branch
          %361 = sbr.rel (%p359) target = $region60
        $region59: #{tpu_custom_call.1} parent=55 // pred_region
          %362 = dma.done %s355, 128
        $region60: #{tpu_custom_call.1} parent=55 // pred_fallthru
          _
        // Predicated region
        $region61: #{tpu_custom_call.1} parent=55 // pred_check
          %p363 = pneg %p70
        $region62: #{tpu_custom_call.1} parent=55 // pred_check_branch
          %365 = sbr.rel (%p363) target = $region64
        $region63: #{tpu_custom_call.1} parent=55 // pred_region
          %366 = dma.done [#allocation6], 1024
        $region64: #{tpu_custom_call.1} parent=55 // pred_fallthru
          _
        // Predicated region
        $region65: #{tpu_custom_call.1} parent=55 // pred_check
          %p367 = pneg %p112
        $region66: #{tpu_custom_call.1} parent=55 // pred_check_branch
          %369 = sbr.rel (%p367) target = $region68
        $region67: #{tpu_custom_call.1} parent=55 // pred_region
          %370 = dma.done [#allocation6], 1024
        $region68: #{tpu_custom_call.1} parent=55 // pred_fallthru
          _
        // Predicated region
        $region69: #{tpu_custom_call.1} parent=55 // pred_check
          %p371 = pneg %p154
        $region70: #{tpu_custom_call.1} parent=55 // pred_check_branch
          %373 = sbr.rel (%p371) target = $region72
        $region71: #{tpu_custom_call.1} parent=55 // pred_region
          %374 = dma.done [#allocation9], 1024
        $region72: #{tpu_custom_call.1} parent=55 // pred_fallthru
          _
        // Predicated region
        $region73: #{tpu_custom_call.1} parent=55 // pred_check
          %p375 = pneg %p196
        $region74: #{tpu_custom_call.1} parent=55 // pred_check_branch
          %377 = sbr.rel (%p375) target = $region76
        $region75: #{tpu_custom_call.1} parent=55 // pred_region
          %378 = dma.done [#allocation9], 2048
        $region76: #{tpu_custom_call.1} parent=55 // pred_fallthru
          _
        %s379 = sand.u32 %s36, 1
        %s380 = scalar_lea.sflag [#allocation3], %s379
        %s381 = sand.u32 %s36, 1
        %s382 = smul.addr %s381, 8
        %s383 = scalar_lea.vmem [#allocation2], %s382
        %p384 = pneg %p49
        %p385 = pneg %p46
        %p386 = pneg %p70
        %p387 = pneg %p67
        %p388 = pneg %p91
        %p389 = pneg %p88
        %p390 = pneg %p112
        %p391 = pneg %p109
        %p392 = pneg %p133
        %p393 = pneg %p130
        %p394 = pneg %p154
        %p395 = pneg %p151
        %p396 = pneg %p175
        %p397 = pneg %p172
        %p398 = pneg %p196
        %p399 = pneg %p193
        %p400 = pneg %p217
        %p401 = pneg %p214
        %p402 = pneg %p243
        %p403 = pneg %p240
        %s404 = sand.u32 %s230, 1
        %s405 = scalar_lea.sflag [#allocation4], %s404
        %s406 = sand.u32 %s230, 1
        %s407 = smul.addr %s406, 16
        %s408 = scalar_lea.vmem [#allocation11], %s407
        %s409 = smul.u32 2, %s28
        %s410 = smul.u32 2, %s28
        %v412 = vld [vmem:[%s358] sm:$0xf]
        %v413 = vld [vmem:[%s358 + $0x4] sm:$0xf]
        %v414 = vld [vmem:[#allocation5] sm:$0xf]
        %v415 = vld [vmem:[#allocation5 + $0x4] sm:$0xf]
        %v416 = vld [vmem:[#allocation5 + $0x8] sm:$0xf]
        %v417 = vld [vmem:[#allocation5 + $0xc] sm:$0xf]
        %v418 = vld [vmem:[#allocation5 + $0x10] sm:$0xf]
        %v419 = vld [vmem:[#allocation5 + $0x14] sm:$0xf]
        %v420 = vld [vmem:[#allocation5 + $0x18] sm:$0xf]
        %v421 = vld [vmem:[#allocation5 + $0x1c] sm:$0xf]
        %v422 = vld [vmem:[#allocation5 + $0x20] sm:$0xf]
        %v423 = vld [vmem:[#allocation5 + $0x24] sm:$0xf]
        %v424 = vld [vmem:[#allocation5 + $0x28] sm:$0xf]
        %v425 = vld [vmem:[#allocation5 + $0x2c] sm:$0xf]
        %v426 = vld [vmem:[#allocation5 + $0x30] sm:$0xf]
        %v427 = vld [vmem:[#allocation5 + $0x34] sm:$0xf]
        %v428 = vld [vmem:[#allocation5 + $0x38] sm:$0xf]
        %v429 = vld [vmem:[#allocation5 + $0x3c] sm:$0xf]
        %v430 = vld [vmem:[%s2] sm:$0x1]
        %v432 = vlaneseq
        %v433 = vshrl.u32 %v432, 7
        %v434 = vsub.s32 0, %v433
        %v435 = vrot.slane %v430, %v434
        %v439 = vunpack.c.l.b16 %v412
        %v440 = vunpack.c.l.b16 %v413
        %v441 = vpack.c.b16 %v440, %v439
        %v459 = vunpack.c.l.b16 %v414
        %v460 = vunpack.c.l.b16 %v415
        %v461 = vunpack.c.l.b16 %v416
        %v462 = vunpack.c.l.b16 %v417
        %v463 = vunpack.c.l.b16 %v418
        %v464 = vunpack.c.l.b16 %v419
        %v465 = vunpack.c.l.b16 %v420
        %v466 = vunpack.c.l.b16 %v421
        %v467 = vunpack.c.l.b16 %v422
        %v468 = vunpack.c.l.b16 %v423
        %v469 = vunpack.c.l.b16 %v424
        %v470 = vunpack.c.l.b16 %v425
        %v471 = vunpack.c.l.b16 %v426
        %v472 = vunpack.c.l.b16 %v427
        %v473 = vunpack.c.l.b16 %v428
        %v474 = vunpack.c.l.b16 %v429
        %v475 = vpack.c.b16 %v460, %v459
        %v476 = vpack.c.b16 %v462, %v461
        %v477 = vpack.c.b16 %v464, %v463
        %v478 = vpack.c.b16 %v466, %v465
        %v479 = vpack.c.b16 %v468, %v467
        %v480 = vpack.c.b16 %v470, %v469
        %v481 = vpack.c.b16 %v472, %v471
        %v482 = vpack.c.b16 %v474, %v473
        %491 = vmatprep.subr.bf16.mxu0 0
        %492 = vmatpush1.bf16.msra.mxu0 %v475
        %493 = vmatprep.subr.bf16.mxu0 0
        %494 = vmatpush1.bf16.msra.mxu0 %v476
        %495 = vmatprep.subr.bf16.mxu0 0
        %496 = vmatpush1.bf16.msra.mxu0 %v477
        %497 = vmatprep.subr.bf16.mxu0 0
        %498 = vmatpush1.bf16.msra.mxu0 %v478
        %499 = vmatprep.subr.bf16.mxu0 0
        %500 = vmatpush1.bf16.msra.mxu0 %v479
        %501 = vmatprep.subr.bf16.mxu0 0
        %502 = vmatpush1.bf16.msra.mxu0 %v480
        %503 = vmatprep.subr.bf16.mxu0 0
        %504 = vmatpush1.bf16.msra.mxu0 %v481
        %505 = vmatprep.subr.bf16.mxu0 0
        %506 = vmatpush1.bf16.msra.mxu0 %v482
        %507 = vmatprep.subr.bf16.mxu0 0
        %508 = vmatpush1.bf16.msra.mxu0 0
        %509 = vmatprep.subr.bf16.mxu0 0
        %510 = vmatpush1.bf16.msra.mxu0 0
        %511 = vmatprep.subr.bf16.mxu0 0
        %512 = vmatpush1.bf16.msra.mxu0 0
        %513 = vmatprep.subr.bf16.mxu0 0
        %514 = vmatpush1.bf16.msra.mxu0 0
        %515 = vmatprep.subr.bf16.mxu0 0
        %516 = vmatpush1.bf16.msra.mxu0 0
        %517 = vmatprep.subr.bf16.mxu0 0
        %518 = vmatpush1.bf16.msra.mxu0 0
        %519 = vmatprep.subr.bf16.mxu0 0
        %520 = vmatpush1.bf16.msra.mxu0 0
        %521 = vmatprep.subr.bf16.mxu0 0
        %522 = vmatpush1.bf16.msra.mxu0 0
        %523 = vmatprep.mubr.bf16.mxu0 0
        %524 = vmatmul.mubr.bf16.gmra.mrb[0].mxu0 %v441
        %v525 = vpop.f32.mrb[0].mxu0
        %v526 = vadd.f32 %v435, %v525
        %v527 = vpop.f32.mrb[0].mxu0
        %v528 = vpop.f32.mrb[0].mxu0
        %v529 = vadd.f32 %v435, %v528
        %v530 = vpop.f32.mrb[0].mxu0
        %531 = vdwg.mxu0
        %v532 = vpack.c.bf16 %v529, %v526
        %v533 = vld [vmem:[#allocation7] sm:$0xf]
        %v534 = vld [vmem:[#allocation7 + $0x4] sm:$0xf]
        %v535 = vld [vmem:[#allocation7 + $0x8] sm:$0xf]
        %v536 = vld [vmem:[#allocation7 + $0xc] sm:$0xf]
        %v537 = vld [vmem:[#allocation7 + $0x10] sm:$0xf]
        %v538 = vld [vmem:[#allocation7 + $0x14] sm:$0xf]
        %v539 = vld [vmem:[#allocation7 + $0x18] sm:$0xf]
        %v540 = vld [vmem:[#allocation7 + $0x1c] sm:$0xf]
        %v541 = vld [vmem:[#allocation7 + $0x20] sm:$0xf]
        %v542 = vld [vmem:[#allocation7 + $0x24] sm:$0xf]
        %v543 = vld [vmem:[#allocation7 + $0x28] sm:$0xf]
        %v544 = vld [vmem:[#allocation7 + $0x2c] sm:$0xf]
        %v545 = vld [vmem:[#allocation7 + $0x30] sm:$0xf]
        %v546 = vld [vmem:[#allocation7 + $0x34] sm:$0xf]
        %v547 = vld [vmem:[#allocation7 + $0x38] sm:$0xf]
        %v548 = vld [vmem:[#allocation7 + $0x3c] sm:$0xf]
        %v549 = vld [vmem:[%s4] sm:$0x1]
        %v551 = vlaneseq
        %v552 = vshrl.u32 %v551, 7
        %v553 = vsub.s32 0, %v552
        %v554 = vrot.slane %v549, %v553
        %v572 = vunpack.c.l.b16 %v533
        %v573 = vunpack.c.l.b16 %v534
        %v574 = vunpack.c.l.b16 %v535
        %v575 = vunpack.c.l.b16 %v536
        %v576 = vunpack.c.l.b16 %v537
        %v577 = vunpack.c.l.b16 %v538
        %v578 = vunpack.c.l.b16 %v539
        %v579 = vunpack.c.l.b16 %v540
        %v580 = vunpack.c.l.b16 %v541
        %v581 = vunpack.c.l.b16 %v542
        %v582 = vunpack.c.l.b16 %v543
        %v583 = vunpack.c.l.b16 %v544
        %v584 = vunpack.c.l.b16 %v545
        %v585 = vunpack.c.l.b16 %v546
        %v586 = vunpack.c.l.b16 %v547
        %v587 = vunpack.c.l.b16 %v548
        %v588 = vpack.c.b16 %v573, %v572
        %v589 = vpack.c.b16 %v575, %v574
        %v590 = vpack.c.b16 %v577, %v576
        %v591 = vpack.c.b16 %v579, %v578
        %v592 = vpack.c.b16 %v581, %v580
        %v593 = vpack.c.b16 %v583, %v582
        %v594 = vpack.c.b16 %v585, %v584
        %v595 = vpack.c.b16 %v587, %v586
        %604 = vmatprep.subr.bf16.mxu0 0
        %605 = vmatpush1.bf16.msra.mxu0 %v588
        %606 = vmatprep.subr.bf16.mxu0 0
        %607 = vmatpush1.bf16.msra.mxu0 %v589
        %608 = vmatprep.subr.bf16.mxu0 0
        %609 = vmatpush1.bf16.msra.mxu0 %v590
        %610 = vmatprep.subr.bf16.mxu0 0
        %611 = vmatpush1.bf16.msra.mxu0 %v591
        %612 = vmatprep.subr.bf16.mxu0 0
        %613 = vmatpush1.bf16.msra.mxu0 %v592
        %614 = vmatprep.subr.bf16.mxu0 0
        %615 = vmatpush1.bf16.msra.mxu0 %v593
        %616 = vmatprep.subr.bf16.mxu0 0
        %617 = vmatpush1.bf16.msra.mxu0 %v594
        %618 = vmatprep.subr.bf16.mxu0 0
        %619 = vmatpush1.bf16.msra.mxu0 %v595
        %620 = vmatprep.subr.bf16.mxu0 0
        %621 = vmatpush1.bf16.msra.mxu0 0
        %622 = vmatprep.subr.bf16.mxu0 0
        %623 = vmatpush1.bf16.msra.mxu0 0
        %624 = vmatprep.subr.bf16.mxu0 0
        %625 = vmatpush1.bf16.msra.mxu0 0
        %626 = vmatprep.subr.bf16.mxu0 0
        %627 = vmatpush1.bf16.msra.mxu0 0
        %628 = vmatprep.subr.bf16.mxu0 0
        %629 = vmatpush1.bf16.msra.mxu0 0
        %630 = vmatprep.subr.bf16.mxu0 0
        %631 = vmatpush1.bf16.msra.mxu0 0
        %632 = vmatprep.subr.bf16.mxu0 0
        %633 = vmatpush1.bf16.msra.mxu0 0
        %634 = vmatprep.subr.bf16.mxu0 0
        %635 = vmatpush1.bf16.msra.mxu0 0
        %636 = vmatprep.mubr.bf16.mxu0 0
        %637 = vmatmul.mubr.bf16.gmra.mrb[0].mxu0 %v532
        %v638 = vpop.f32.mrb[0].mxu0
        %v639 = vadd.f32 %v554, %v638
        %v640 = vpop.f32.mrb[0].mxu0
        %v641 = vpop.f32.mrb[0].mxu0
        %v642 = vadd.f32 %v554, %v641
        %v643 = vpop.f32.mrb[0].mxu0
        %644 = vdwg.mxu0
        %v645 = vpack.c.bf16 %v642, %v639
        %v646 = vld [vmem:[#allocation8] sm:$0xf]
        %v647 = vld [vmem:[#allocation8 + $0x4] sm:$0xf]
        %v648 = vld [vmem:[#allocation8 + $0x8] sm:$0xf]
        %v649 = vld [vmem:[#allocation8 + $0xc] sm:$0xf]
        %v650 = vld [vmem:[#allocation8 + $0x10] sm:$0xf]
        %v651 = vld [vmem:[#allocation8 + $0x14] sm:$0xf]
        %v652 = vld [vmem:[#allocation8 + $0x18] sm:$0xf]
        %v653 = vld [vmem:[#allocation8 + $0x1c] sm:$0xf]
        %v654 = vld [vmem:[#allocation8 + $0x20] sm:$0xf]
        %v655 = vld [vmem:[#allocation8 + $0x24] sm:$0xf]
        %v656 = vld [vmem:[#allocation8 + $0x28] sm:$0xf]
        %v657 = vld [vmem:[#allocation8 + $0x2c] sm:$0xf]
        %v658 = vld [vmem:[#allocation8 + $0x30] sm:$0xf]
        %v659 = vld [vmem:[#allocation8 + $0x34] sm:$0xf]
        %v660 = vld [vmem:[#allocation8 + $0x38] sm:$0xf]
        %v661 = vld [vmem:[#allocation8 + $0x3c] sm:$0xf]
        %v662 = vld [vmem:[%s6] sm:$0x1]
        %v664 = vlaneseq
        %v665 = vshrl.u32 %v664, 7
        %v666 = vsub.s32 0, %v665
        %v667 = vrot.slane %v662, %v666
        %v685 = vunpack.c.l.b16 %v646
        %v686 = vunpack.c.l.b16 %v647
        %v687 = vunpack.c.l.b16 %v648
        %v688 = vunpack.c.l.b16 %v649
        %v689 = vunpack.c.l.b16 %v650
        %v690 = vunpack.c.l.b16 %v651
        %v691 = vunpack.c.l.b16 %v652
        %v692 = vunpack.c.l.b16 %v653
        %v693 = vunpack.c.l.b16 %v654
        %v694 = vunpack.c.l.b16 %v655
        %v695 = vunpack.c.l.b16 %v656
        %v696 = vunpack.c.l.b16 %v657
        %v697 = vunpack.c.l.b16 %v658
        %v698 = vunpack.c.l.b16 %v659
        %v699 = vunpack.c.l.b16 %v660
        %v700 = vunpack.c.l.b16 %v661
        %v701 = vpack.c.b16 %v686, %v685
        %v702 = vpack.c.b16 %v688, %v687
        %v703 = vpack.c.b16 %v690, %v689
        %v704 = vpack.c.b16 %v692, %v691
        %v705 = vpack.c.b16 %v694, %v693
        %v706 = vpack.c.b16 %v696, %v695
        %v707 = vpack.c.b16 %v698, %v697
        %v708 = vpack.c.b16 %v700, %v699
        %717 = vmatprep.subr.bf16.mxu0 0
        %718 = vmatpush1.bf16.msra.mxu0 %v701
        %719 = vmatprep.subr.bf16.mxu0 0
        %720 = vmatpush1.bf16.msra.mxu0 %v702
        %721 = vmatprep.subr.bf16.mxu0 0
        %722 = vmatpush1.bf16.msra.mxu0 %v703
        %723 = vmatprep.subr.bf16.mxu0 0
        %724 = vmatpush1.bf16.msra.mxu0 %v704
        %725 = vmatprep.subr.bf16.mxu0 0
        %726 = vmatpush1.bf16.msra.mxu0 %v705
        %727 = vmatprep.subr.bf16.mxu0 0
        %728 = vmatpush1.bf16.msra.mxu0 %v706
        %729 = vmatprep.subr.bf16.mxu0 0
        %730 = vmatpush1.bf16.msra.mxu0 %v707
        %731 = vmatprep.subr.bf16.mxu0 0
        %732 = vmatpush1.bf16.msra.mxu0 %v708
        %733 = vmatprep.subr.bf16.mxu0 0
        %734 = vmatpush1.bf16.msra.mxu0 0
        %735 = vmatprep.subr.bf16.mxu0 0
        %736 = vmatpush1.bf16.msra.mxu0 0
        %737 = vmatprep.subr.bf16.mxu0 0
        %738 = vmatpush1.bf16.msra.mxu0 0
        %739 = vmatprep.subr.bf16.mxu0 0
        %740 = vmatpush1.bf16.msra.mxu0 0
        %741 = vmatprep.subr.bf16.mxu0 0
        %742 = vmatpush1.bf16.msra.mxu0 0
        %743 = vmatprep.subr.bf16.mxu0 0
        %744 = vmatpush1.bf16.msra.mxu0 0
        %745 = vmatprep.subr.bf16.mxu0 0
        %746 = vmatpush1.bf16.msra.mxu0 0
        %747 = vmatprep.subr.bf16.mxu0 0
        %748 = vmatpush1.bf16.msra.mxu0 0
        %749 = vmatprep.mubr.bf16.mxu0 0
        %750 = vmatmul.mubr.bf16.gmra.mrb[0].mxu0 %v645
        %v751 = vpop.f32.mrb[0].mxu0
        %v752 = vadd.f32 %v667, %v751
        %v753 = vpop.f32.mrb[0].mxu0
        %v754 = vpop.f32.mrb[0].mxu0
        %v755 = vadd.f32 %v667, %v754
        %v756 = vpop.f32.mrb[0].mxu0
        %757 = vdwg.mxu0
        %v758 = vadd.f32 %v526, %v752
        %v759 = vadd.f32 %v529, %v755
        %v760 = vmax.f32 %v758, 0.0
        %v761 = vmax.f32 %v759, 0.0
        %v762 = vld [vmem:[#allocation10] sm:$0xff]
        %v763 = vld [vmem:[#allocation10 + $0x8] sm:$0xff]
        %v764 = vld [vmem:[#allocation10 + $0x10] sm:$0xff]
        %v765 = vld [vmem:[#allocation10 + $0x18] sm:$0xff]
        %v766 = vld [vmem:[#allocation10 + $0x20] sm:$0xff]
        %v767 = vld [vmem:[#allocation10 + $0x28] sm:$0xff]
        %v768 = vld [vmem:[#allocation10 + $0x30] sm:$0xff]
        %v769 = vld [vmem:[#allocation10 + $0x38] sm:$0xff]
        %v770 = vld [vmem:[#allocation10 + $0x40] sm:$0xff]
        %v771 = vld [vmem:[#allocation10 + $0x48] sm:$0xff]
        %v772 = vld [vmem:[#allocation10 + $0x50] sm:$0xff]
        %v773 = vld [vmem:[#allocation10 + $0x58] sm:$0xff]
        %v774 = vld [vmem:[#allocation10 + $0x60] sm:$0xff]
        %v775 = vld [vmem:[#allocation10 + $0x68] sm:$0xff]
        %v776 = vld [vmem:[#allocation10 + $0x70] sm:$0xff]
        %v777 = vld [vmem:[#allocation10 + $0x78] sm:$0xff]
        %v778 = vld [vmem:[%s8] sm:$0x1]
        %v780 = vlaneseq
        %v781 = vshrl.u32 %v780, 7
        %v782 = vsub.s32 0, %v781
        %v783 = vrot.slane %v778, %v782
        %785 = vmatprep.subr.mxu0 0.0
        %786 = vmatpush1.msra.mxu0 %v762
        %787 = vmatprep.subr.mxu0 0.0
        %788 = vmatpush1.msra.mxu0 %v763
        %789 = vmatprep.subr.mxu0 0.0
        %790 = vmatpush1.msra.mxu0 %v764
        %791 = vmatprep.subr.mxu0 0.0
        %792 = vmatpush1.msra.mxu0 %v765
        %793 = vmatprep.subr.mxu0 0.0
        %794 = vmatpush1.msra.mxu0 %v766
        %795 = vmatprep.subr.mxu0 0.0
        %796 = vmatpush1.msra.mxu0 %v767
        %797 = vmatprep.subr.mxu0 0.0
        %798 = vmatpush1.msra.mxu0 %v768
        %799 = vmatprep.subr.mxu0 0.0
        %800 = vmatpush1.msra.mxu0 %v769
        %801 = vmatprep.subr.mxu0 0.0
        %802 = vmatpush1.msra.mxu0 %v770
        %803 = vmatprep.subr.mxu0 0.0
        %804 = vmatpush1.msra.mxu0 %v771
        %805 = vmatprep.subr.mxu0 0.0
        %806 = vmatpush1.msra.mxu0 %v772
        %807 = vmatprep.subr.mxu0 0.0
        %808 = vmatpush1.msra.mxu0 %v773
        %809 = vmatprep.subr.mxu0 0.0
        %810 = vmatpush1.msra.mxu0 %v774
        %811 = vmatprep.subr.mxu0 0.0
        %812 = vmatpush1.msra.mxu0 %v775
        %813 = vmatprep.subr.mxu0 0.0
        %814 = vmatpush1.msra.mxu0 %v776
        %815 = vmatprep.subr.mxu0 0.0
        %816 = vmatpush1.msra.mxu0 %v777
        %817 = vmatprep.subr.mxu0 0.0
        %818 = vmatpush1.msra.mxu0 0.0
        %819 = vmatprep.subr.mxu0 0.0
        %820 = vmatpush1.msra.mxu0 0.0
        %821 = vmatprep.subr.mxu0 0.0
        %822 = vmatpush1.msra.mxu0 0.0
        %823 = vmatprep.subr.mxu0 0.0
        %824 = vmatpush1.msra.mxu0 0.0
        %825 = vmatprep.subr.mxu0 0.0
        %826 = vmatpush1.msra.mxu0 0.0
        %827 = vmatprep.subr.mxu0 0.0
        %828 = vmatpush1.msra.mxu0 0.0
        %829 = vmatprep.subr.mxu0 0.0
        %830 = vmatpush1.msra.mxu0 0.0
        %831 = vmatprep.subr.mxu0 0.0
        %832 = vmatpush1.msra.mxu0 0.0
        %833 = vmatprep.subr.mxu0 0.0
        %834 = vmatpush1.msra.mxu0 0.0
        %835 = vmatprep.subr.mxu0 0.0
        %836 = vmatpush1.msra.mxu0 0.0
        %837 = vmatprep.subr.mxu0 0.0
        %838 = vmatpush1.msra.mxu0 0.0
        %839 = vmatprep.subr.mxu0 0.0
        %840 = vmatpush1.msra.mxu0 0.0
        %841 = vmatprep.subr.mxu0 0.0
        %842 = vmatpush1.msra.mxu0 0.0
        %843 = vmatprep.subr.mxu0 0.0
        %844 = vmatpush1.msra.mxu0 0.0
        %845 = vmatprep.subr.mxu0 0.0
        %846 = vmatpush1.msra.mxu0 0.0
        %847 = vmatprep.subr.mxu0 0.0
        %848 = vmatpush1.msra.mxu0 0.0
        %849 = vmatprep.mubr.f32.mxu0 0.0
        %850 = vmatmul.mubr.f32.gmra.mrb[0].mxu0 %v760
        %v851 = vpop.f32.mrb[0].mxu0
        %v852 = vadd.f32 %v783, %v851
        %v853 = vpop.f32.mrb[0].mxu0
        %854 = vmatprep.mubr.f32.mxu0 0.0
        %855 = vmatmul.mubr.f32.gmra.mrb[0].mxu0 %v761
        %v856 = vpop.f32.mrb[0].mxu0
        %v857 = vadd.f32 %v783, %v856
        %v858 = vpop.f32.mrb[0].mxu0
        %859 = vdwg.mxu0
        %v860 = vlaneseq
        %v861 = vand.u32 %v860, 127
        %vm862 = vcmp.lt.s32.totalorder %v861, 16
        %v863 = vsel %vm862, %v852, -1e+30
        %v864 = vsel %vm862, %v857, -1e+30
        %865 = vmax.xlane.f32.xlu0 %v863
        %v866 = vpop.xlane.xlu0 %865
        %867 = vmax.xlane.f32.xlu0 %v864
        %v868 = vpop.xlane.xlu0 %867
        %v869 = vsub.f32 %v863, %v866
        %v870 = vsub.f32 %v864, %v868
        %v871 = vmul.f32 %v869, 1.442695
        %v872 = vpow.pop %v871
        %v873 = vmul.f32 %v870, 1.442695
        %v874 = vpow.pop %v873
        %v875 = vsel %vm862, %v872, 0.0
        %v876 = vsel %vm862, %v874, 0.0
        %877 = vadd.xlane.f32.xlu0 %v875
        %v878 = vpop.xlane.xlu0 %877
        %879 = vadd.xlane.f32.xlu0 %v876
        %v880 = vpop.xlane.xlu0 %879
        %v881 = vlog2.pop %v878
        %v882 = vmul.f32 %v881, 0.6931472
        %v883 = vlog2.pop %v880
        %v884 = vmul.f32 %v883, 0.6931472
        %v885 = vsub.f32 %v869, %v882
        %v886 = vsub.f32 %v870, %v884
        %887 = vst [vmem:[%s408] sm:$0xff] %v885
        %888 = vst [vmem:[%s408 + $0x8] sm:$0xff] %v886
        %s889 = sand.u32 %s230, 1
        %s890 = scalar_lea.sflag [#allocation4], %s889
        %s891 = sand.u32 %s230, 1
        %s892 = smul.addr %s891, 16
        %s893 = scalar_lea.vmem [#allocation11], %s892
        // Predicated region
        $region77: #{tpu_custom_call.1} parent=55 // pred_check
          %p894 = pneg %p240
        $region78: #{tpu_custom_call.1} parent=55 // pred_check_branch
          %896 = sbr.rel (%p894) target = $region80
        $region79: #{tpu_custom_call.1} parent=55 // pred_region
          %s897 = smul.u32 2, %s28
          %s899 = ssub.s32 256, 256
          %900 = vsyncadd %s890, %s899
          %s901 = smul.addr %s897, 128
          %s902 = scalar_lea.hbm %s9, %s901
          %s903 = sshll.u32 %s893, 4
          %s904 = int_to_ptr.vmem [resolvable:$true] %s903
          %909 = dma.vmem_to_hbm [thread:$0]  %s904, 256, %s902, %s890, 128, 128, 8
        $region80: #{tpu_custom_call.1} parent=55 // pred_fallthru
          _
      $region56: #{tpu_custom_call.1} parent=5 // pred_fallthru
        _
      %p910 = scmp.le.s32.totalorder 2, %s23
      // Predicated region
      $region81: #{tpu_custom_call.1} parent=5 // pred_check
        %p911 = pneg %p910
      $region82: #{tpu_custom_call.1} parent=5 // pred_check_branch
        %913 = sbr.rel (%p911) target = $region84
      $region83: #{tpu_custom_call.1} parent=5 // pred_region
        %s914 = ssub.s32 %s23, 2
        // Predicated region
        $region85: #{tpu_custom_call.1} parent=83 // pred_check
          %p915 = pneg %p246
        $region86: #{tpu_custom_call.1} parent=83 // pred_check_branch
          %917 = sbr.rel (%p915) target = $region88
        $region87: #{tpu_custom_call.1} parent=83 // pred_region
          %s918 = sand.u32 %s231, 1
          %s919 = scalar_lea.sflag [#allocation4], %s918
          %s920 = sand.u32 %s231, 1
          %s921 = smul.addr %s920, 16
          %s922 = scalar_lea.vmem [#allocation11], %s921
          %923 = dma.done %s919, 256
        $region88: #{tpu_custom_call.1} parent=83 // pred_fallthru
          _
      $region84: #{tpu_custom_call.1} parent=5 // pred_fallthru
        _
    $region6: #{tpu_custom_call.1} parent=1 // loop_footer
      %s27 = sadd.s32 1, %s23
    $region7: #{tpu_custom_call.1} parent=1 // loop_footer_branch
      %22 = sbr.rel target = $region3
    $region8: #{tpu_custom_call.1} parent=1 // loop_exit
      _
    %924 = vsyncpa [#allocation3], 1
    %s925 = scalar_lea.sflag [#allocation3], 1
    %926 = vsyncpa %s925, 1
    %927 = vsyncpa [#allocation6], 1
    %928 = vsyncpa [#allocation9], 1
    %929 = vsyncpa [#allocation4], 1
    %s930 = scalar_lea.sflag [#allocation4], 1
    %931 = vsyncpa %s930, 1

</llo_original>
